<compile_context>
chip_gen: v6e
topology: v6e:2x2x1
jax: 0.10.0
libtpu: 0.0.40
codegen_flags: <defaults>
</compile_context>

<pallas_src>
import functools

import jax
import jax.numpy as jnp
from jax import lax
from jax.experimental import pallas as pl
from jax.experimental.pallas import tpu as pltpu

EPS = 1e-5


def _round_up(a, m):
    return ((a + m - 1) // m) * m


def _tpu_generation():
    """Best-effort TPU generation (5, 6, 7, ...); defaults to 6."""
    try:
        kind = jax.devices()[0].device_kind.lower()
    except Exception:
        return 6
    for g in (7, 6, 5, 4, 3, 2):
        if f"v{g}" in kind:
            return g
    return 6


def prenorm_kernel(x_ref, gamma_ref, beta_ref, w_ref, b_ref, o_ref, *,
                   d_valid, d_padded):
    """One (row_tile, Dp) slab: LayerNorm over the last dim, then xn @ W + b."""
    x = x_ref[...].astype(jnp.float32)                      # (TR, Dp)
    inv_d = jnp.float32(1.0 / d_valid)
    # Two-pass statistics (same numerics as PyTorch LayerNorm; VPU/XLU work is
    # free filler under the MXU-bound matmul).
    mean = jnp.sum(x, axis=-1, keepdims=True) * inv_d
    centered = x - mean
    if d_valid != d_padded:
        # Zero the padded lanes so they do not contribute to the variance.
        lane = lax.broadcasted_iota(jnp.int32, x.shape, 1)
        centered = jnp.where(lane < d_valid, centered, 0.0)
    var = jnp.sum(centered * centered, axis=-1, keepdims=True) * inv_d
    inv_std = lax.rsqrt(var + EPS)
    # gamma/beta are zero-padded past d_valid, so xn is exactly 0 on pad lanes.
    xn = centered * inv_std * gamma_ref[...].astype(jnp.float32) \
         + beta_ref[...].astype(jnp.float32)
    # Feed the MXU in W's dtype (bf16 by default) with f32 accumulation.
    y = jnp.dot(xn.astype(w_ref.dtype), w_ref[...],
                preferred_element_type=jnp.float32)
    y = y + b_ref[...].astype(jnp.float32)
    o_ref[...] = y.astype(o_ref.dtype)


def prepare_prenorm_params(gamma, beta, w, b, *, mxu_dtype=jnp.bfloat16):
    """Pad parameters to a lane-dense Dp and cast W once (not per call).

    mxu_dtype=None keeps W's dtype (full-f32 matmul; debug-only on v5e).
    """
    D = int(gamma.shape[0])
    Dp = _round_up(D, 128)
    pad = Dp - D
    w_dtype = mxu_dtype if mxu_dtype is not None else w.dtype
    return dict(
        d=D,
        dp=Dp,
        gamma=jnp.pad(gamma, (0, pad)).reshape(1, Dp),
        beta=jnp.pad(beta, (0, pad)).reshape(1, Dp),
        w=jnp.pad(w, ((0, pad), (0, pad))).astype(w_dtype),
        b=jnp.pad(b, (0, pad)).reshape(1, Dp),
    )


def prenorm(x, params, *, row_tile=None):
    """x: (B, S, D). Returns fn(LayerNorm(x)) with fn = Linear(D, D)."""
    B, S, D = x.shape
    if D != params["d"]:
        raise ValueError("params were prepared for a different dim")
    Dp = params["dp"]
    R = B * S
    gen = _tpu_generation()

    x_bytes = jnp.dtype(x.dtype).itemsize
    w_bytes = jnp.dtype(params["w"].dtype).itemsize

    # ---- column tiling for large resident weights (v7x: 64 MiB VMEM) -------
    col_tiled = Dp * Dp * w_bytes > (16 << 20)
    if col_tiled:
        tn = min(Dp, max(128, ((8 << 20) // (Dp * w_bytes) // 128) * 128))
        while Dp % tn != 0:
            tn -= 128
    else:
        tn = Dp

    # ---- generation-aware row tile ------------------------------------------
    sub = 16 if x_bytes == 2 else 8               # sublane packing of x/out blocks
    base = 128 if gen <= 5 else 256
    tr_cap = 512 if gen >= 7 else 1024            # f32 temps make 1024 risky on v7x
    if row_tile is None:
        budget = (48 if gen >= 7 else 88) << 20
        w_vmem = (2 * Dp * tn * w_bytes) if col_tiled else (Dp * Dp * w_bytes)
        per_row = (2 * Dp * x_bytes               # x block, double-buffered
                   + 2 * tn * x_bytes             # out block, double-buffered
                   + 3 * Dp * 4)                  # f32 intermediates (x, xn, y)
        avail = max(budget - w_vmem - 8 * Dp * 4, per_row * base)
        row_tile = min(tr_cap, max(base, (avail // per_row // base) * base))
        if gen >= 7 and R >= 2 * base:
            # keep >= 2 row steps so both v7x TensorCores get work
            row_tile = min(row_tile, max(base, ((R // 2) // base) * base))
    tr = _round_up(min(row_tile, R), sub)
    if gen >= 7 and R > tr:
        # Round to an even number of row steps so the 2 TensorCores balance.
        n = pl.cdiv(R, tr)
        if n % 2 == 1:
            tr = max(sub, _round_up(pl.cdiv(R, n + 1), sub))
    n_row = pl.cdiv(R, tr)

    # ---- activations: no row padding (cdiv grid + masked edge block); columns
    # padded only when D is not already lane-dense.
    x2 = x.reshape(R, D)
    if Dp != D:
        x2 = jnp.pad(x2, ((0, 0), (0, Dp - D)))

    # ---- VMEM limit & cost hint ---------------------------------------------
    w_vmem = (2 * Dp * tn * w_bytes) if col_tiled else (Dp * Dp * w_bytes)
    needed = (2 * tr * Dp * x_bytes               # x blocks (double-buffered)
              + 2 * tr * tn * x_bytes             # out blocks (double-buffered)
              + 3 * tr * Dp * 4                   # f32 intermediates
              + w_vmem                            # weight (single- or col-tiled)
              + 8 * Dp * 4)                       # gamma / beta / bias
    cap = (56 if gen >= 7 else 100) << 20
    vmem_limit = int(min(cap, max(32 << 20, needed * 5 // 4 + (1 << 20))))
    cost = pl.CostEstimate(
        flops=2 * R * Dp * Dp,
        transcendentals=R,
        bytes_accessed=2 * R * Dp * x_bytes + Dp * Dp * w_bytes + 3 * Dp * 4,
    )

    buf1 = pl.Buffered(1)                         # grid-invariant operands
    if col_tiled:
        grid = (n_row, Dp // tn)
        in_specs = [
            pl.BlockSpec((tr, Dp), lambda i, j: (i, 0)),                         # x rows
            pl.BlockSpec((1, Dp), lambda i, j: (0, 0), pipeline_mode=buf1),      # gamma
            pl.BlockSpec((1, Dp), lambda i, j: (0, 0), pipeline_mode=buf1),      # beta
            pl.BlockSpec((Dp, tn), lambda i, j: (0, j)),                         # W cols
            pl.BlockSpec((1, tn), lambda i, j: (0, j)),                          # bias cols
        ]
        out_spec = pl.BlockSpec((tr, tn), lambda i, j: (i, j))
        dims = ("parallel", "parallel")
    else:
        grid = (n_row,)
        in_specs = [
            pl.BlockSpec((tr, Dp), lambda i: (i, 0)),                            # x rows
            pl.BlockSpec((1, Dp), lambda i: (0, 0), pipeline_mode=buf1),         # gamma
            pl.BlockSpec((1, Dp), lambda i: (0, 0), pipeline_mode=buf1),         # beta
            pl.BlockSpec((Dp, Dp), lambda i: (0, 0), pipeline_mode=buf1),        # W (resident)
            pl.BlockSpec((1, Dp), lambda i: (0, 0), pipeline_mode=buf1),         # bias
        ]
        out_spec = pl.BlockSpec((tr, Dp), lambda i: (i, 0))
        dims = ("parallel",)

    out = pl.pallas_call(
        functools.partial(prenorm_kernel, d_valid=D, d_padded=Dp),
        out_shape=jax.ShapeDtypeStruct((R, Dp), x.dtype),
        grid_spec=pltpu.PrefetchScalarGridSpec(
            num_scalar_prefetch=0,
            grid=grid,
            in_specs=in_specs,
            out_specs=out_spec,
        ),
        compiler_params=pltpu.CompilerParams(
            dimension_semantics=dims,
            vmem_limit_bytes=vmem_limit),
        cost_estimate=cost,
    )(x2, params["gamma"], params["beta"], params["w"], params["b"])

    if Dp != D:
        out = out[:, :D]
    return out.reshape(B, S, D)


def prenorm_ref(x, gamma, beta, w, b):
    xf = x.astype(jnp.float32)
    mean = jnp.mean(xf, axis=-1, keepdims=True)
    var = jnp.mean((xf - mean) ** 2, axis=-1, keepdims=True)
    xn = (xf - mean) * lax.rsqrt(var + EPS)
    xn = xn * gamma + beta
    return (xn @ w + b).astype(x.dtype)


if __name__ == "__main__":
    B, S, D = 2, 8, 32
    key = jax.random.PRNGKey(0)
    kx, kw, kb = jax.random.split(key, 3)

    x = jax.random.normal(kx, (B, S, D), dtype=jnp.float32)

    # LayerNorm params: PyTorch default init (weight=1, bias=0)
    gamma = jnp.ones((D,), dtype=jnp.float32)
    beta = jnp.zeros((D,), dtype=jnp.float32)

    # fn = Linear(D, D), deterministic init
    w = jax.random.normal(kw, (D, D), dtype=jnp.float32) * (1.0 / jnp.sqrt(D))
    b = jax.random.normal(kb, (D,), dtype=jnp.float32) * 0.01

    ref = prenorm_ref(x, gamma, beta, w, b)

    # Strict check: full-f32 MXU path must match the reference tightly.
    # (Debug-only path on v5e: f32 MXU operands cost multiple passes there.)
    params_f32 = prepare_prenorm_params(gamma, beta, w, b, mxu_dtype=None)
    out_f32 = jax.block_until_ready(prenorm(x, params_f32))
    if not jnp.allclose(out_f32, ref, atol=1e-4, rtol=1e-4):
        raise AssertionError("Pallas PreNorm (f32 matmul path) does not match reference")

    # Production default: bf16 MXU operands with f32 accumulation (looser tol).
    params_bf16 = prepare_prenorm_params(gamma, beta, w, b)
    out_bf16 = jax.block_until_ready(prenorm(x, params_bf16))
    if not jnp.allclose(out_bf16, ref, atol=5e-2, rtol=5e-2):
        raise AssertionError("Pallas PreNorm (bf16 MXU path) does not match reference")

    print("KERNEL_OK")
</pallas_src>

<mosaic_0001>
module attributes {stable_mosaic.version = 11 : i64} {
  func.func @prenorm_kernel(%arg0: i32, %arg1: memref<16x128xf32, #tpu.memory_space<vmem>>, %arg2: memref<1x128xf32, #tpu.memory_space<vmem>>, %arg3: memref<1x128xf32, #tpu.memory_space<vmem>>, %arg4: memref<128x128xf32, #tpu.memory_space<vmem>>, %arg5: memref<1x128xf32, #tpu.memory_space<vmem>>, %arg6: memref<16x128xf32, #tpu.memory_space<vmem>>) attributes {dimension_semantics = [#tpu.dimension_semantics<parallel>], iteration_bounds = array<i64: 1>, scalar_prefetch = 0 : i64, scratch_operands = 0 : i64, tpu.core_type = #tpu.core_type<tc>, window_params = [{transform_indices = @transform_0, window_bounds = array<i64: 16, 128>}, {pipeline_mode = #tpu.pipeline_mode<synchronous>, transform_indices = @transform_1, window_bounds = array<i64: 1, 128>}, {pipeline_mode = #tpu.pipeline_mode<synchronous>, transform_indices = @transform_2, window_bounds = array<i64: 1, 128>}, {pipeline_mode = #tpu.pipeline_mode<synchronous>, transform_indices = @transform_3, window_bounds = array<i64: 128, 128>}, {pipeline_mode = #tpu.pipeline_mode<synchronous>, transform_indices = @transform_4, window_bounds = array<i64: 1, 128>}, {transform_indices = @transform_5, window_bounds = array<i64: 16, 128>}]} {
    %c0 = arith.constant 0 : index
    %c0_0 = arith.constant 0 : index
    %0 = vector.load %arg1[%c0, %c0_0] : memref<16x128xf32, #tpu.memory_space<vmem>>, vector<16x128xf32>
    %cst = arith.constant dense<0.000000e+00> : vector<16xf32>
    %1 = vector.multi_reduction <add>, %0, %cst [1] : vector<16x128xf32> to vector<16xf32>
    %2 = vector.shape_cast %1 : vector<16xf32> to vector<16x1xf32>
    %cst_1 = arith.constant 3.125000e-02 : f32
    %3 = vector.broadcast %cst_1 : f32 to vector<16x1xf32>
    %4 = arith.mulf %2, %3 : vector<16x1xf32>
    %5 = vector.broadcast %4 : vector<16x1xf32> to vector<16x128xf32>
    %6 = arith.subf %0, %5 : vector<16x128xf32>
    %7 = tpu.iota {dimensions = array<i32: 1>} : vector<16x128xi32>
    %c32_i32 = arith.constant 32 : i32
    %8 = vector.broadcast %c32_i32 : i32 to vector<16x128xi32>
    %9 = arith.cmpi slt, %7, %8 : vector<16x128xi32>
    %cst_2 = arith.constant 0.000000e+00 : f32
    %10 = vector.broadcast %cst_2 : f32 to vector<16x128xf32>
    %11 = arith.select %9, %6, %10 : vector<16x128xi1>, vector<16x128xf32>
    %12 = arith.mulf %11, %11 : vector<16x128xf32>
    %cst_3 = arith.constant dense<0.000000e+00> : vector<16xf32>
    %13 = vector.multi_reduction <add>, %12, %cst_3 [1] : vector<16x128xf32> to vector<16xf32>
    %14 = vector.shape_cast %13 : vector<16xf32> to vector<16x1xf32>
    %cst_4 = arith.constant 3.125000e-02 : f32
    %15 = vector.broadcast %cst_4 : f32 to vector<16x1xf32>
    %16 = arith.mulf %14, %15 : vector<16x1xf32>
    %cst_5 = arith.constant 9.99999974E-6 : f32
    %17 = vector.broadcast %cst_5 : f32 to vector<16x1xf32>
    %18 = arith.addf %16, %17 : vector<16x1xf32>
    %19 = math.rsqrt %18 : vector<16x1xf32>
    %20 = vector.broadcast %19 : vector<16x1xf32> to vector<16x128xf32>
    %21 = arith.mulf %11, %20 : vector<16x128xf32>
    %c0_6 = arith.constant 0 : index
    %c0_7 = arith.constant 0 : index
    %22 = vector.load %arg2[%c0_6, %c0_7] : memref<1x128xf32, #tpu.memory_space<vmem>>, vector<1x128xf32>
    %23 = vector.broadcast %22 : vector<1x128xf32> to vector<16x128xf32>
    %24 = arith.mulf %21, %23 : vector<16x128xf32>
    %c0_8 = arith.constant 0 : index
    %c0_9 = arith.constant 0 : index
    %25 = vector.load %arg3[%c0_8, %c0_9] : memref<1x128xf32, #tpu.memory_space<vmem>>, vector<1x128xf32>
    %26 = vector.broadcast %25 : vector<1x128xf32> to vector<16x128xf32>
    %27 = arith.addf %24, %26 : vector<16x128xf32>
    %c0_10 = arith.constant 0 : index
    %c0_11 = arith.constant 0 : index
    %28 = vector.load %arg4[%c0_10, %c0_11] : memref<128x128xf32, #tpu.memory_space<vmem>>, vector<128x128xf32>
    %cst_12 = arith.constant dense<0.000000e+00> : vector<16x128xf32>
    %29 = tpu.matmul %27, %28, %cst_12 {dimension_numbers = #tpu.dot_dimension_numbers<[1], [0], [0], [1], [0, 0, 1, 1], [], []>} : vector<16x128xf32>, vector<128x128xf32>, vector<16x128xf32> -> vector<16x128xf32>
    %c0_13 = arith.constant 0 : index
    %c0_14 = arith.constant 0 : index
    %30 = vector.load %arg5[%c0_13, %c0_14] : memref<1x128xf32, #tpu.memory_space<vmem>>, vector<1x128xf32>
    %31 = vector.broadcast %30 : vector<1x128xf32> to vector<16x128xf32>
    %32 = arith.addf %29, %31 : vector<16x128xf32>
    %c0_15 = arith.constant 0 : index
    %c0_16 = arith.constant 0 : index
    %33 = vector.load %arg6[%c0_15, %c0_16] : memref<16x128xf32, #tpu.memory_space<vmem>>, vector<16x128xf32>
    tpu.vector_store %arg6[%c0_15, %c0_16], %32 {strides = array<i32>} : memref<16x128xf32, #tpu.memory_space<vmem>>, vector<16x128xf32>,
    return
  }
  func.func @transform_0(%arg0: i32) -> (i32, i32) {
    %c0_i32 = arith.constant 0 : i32
    %c0_i32_0 = arith.constant 0 : i32
    return %arg0, %c0_i32 : i32, i32
  }
  func.func @transform_1(%arg0: i32) -> (i32, i32) {
    %c0_i32 = arith.constant 0 : i32
    %c0_i32_0 = arith.constant 0 : i32
    %c0_i32_1 = arith.constant 0 : i32
    return %c0_i32, %c0_i32_0 : i32, i32
  }
  func.func @transform_2(%arg0: i32) -> (i32, i32) {
    %c0_i32 = arith.constant 0 : i32
    %c0_i32_0 = arith.constant 0 : i32
    %c0_i32_1 = arith.constant 0 : i32
    return %c0_i32, %c0_i32_0 : i32, i32
  }
  func.func @transform_3(%arg0: i32) -> (i32, i32) {
    %c0_i32 = arith.constant 0 : i32
    %c0_i32_0 = arith.constant 0 : i32
    %c0_i32_1 = arith.constant 0 : i32
    return %c0_i32, %c0_i32_0 : i32, i32
  }
  func.func @transform_4(%arg0: i32) -> (i32, i32) {
    %c0_i32 = arith.constant 0 : i32
    %c0_i32_0 = arith.constant 0 : i32
    %c0_i32_1 = arith.constant 0 : i32
    return %c0_i32, %c0_i32_0 : i32, i32
  }
  func.func @transform_5(%arg0: i32) -> (i32, i32) {
    %c0_i32 = arith.constant 0 : i32
    %c0_i32_0 = arith.constant 0 : i32
    return %arg0, %c0_i32 : i32, i32
  }
}

</mosaic_0001>

<llo_original>
// kernel: tpu_custom_call.1
$region0: #{tpu_custom_call.1}
  #allocation0 [shape = 'u32[]', space=smem, size = 0x4, offset = 0x4, fixed_abs, tag = 'smem constant byte address 0x4 - core index']
  #allocation1 [shape = 'u32[144,128]{1,0:T(1,128)}', space=vmem, size = 0x12000, scoped, tag = 'internal scratch']
  %s0 = inlined_call_operand.hbm [shape: f32[16,128], index: 0, kind: input, shape index: {}]
  %s1 = inlined_call_operand.vmem [shape: f32[1,128], index: 1, kind: input, shape index: {}]
  %s2 = inlined_call_operand.vmem [shape: f32[1,128], index: 2, kind: input, shape index: {}]
  %s3 = inlined_call_operand.hbm [shape: f32[128,128], index: 3, kind: input, shape index: {}]
  %s4 = inlined_call_operand.vmem [shape: f32[1,128], index: 4, kind: input, shape index: {}]
  %s5 = inlined_call_operand.hbm [shape: f32[16,128], index: 5, kind: output, shape index: {}]
  %s6 = sld [smem:[#allocation0]]
  $region38: #{tpu_custom_call.1} parent=0
    _
  %s8 = ssub.s32 1, %s6
  %s9 = scalar_select 0, %s8, %s6
  $region1: #{tpu_custom_call.1} parent=0
    #allocation2 [shape = 'u8[8192]{0}', space=vmem, size = 0x2000, scoped, tag = 'input window, operand 0, single buffered']
    #allocation3 [shape = 's32[1]{0}', space=sflag, size = 0x4, scoped, tag = 'scoped memory for tpu_custom_call.1']
    #allocation4 [shape = 's32[1]{0}', space=sflag, size = 0x4, scoped, tag = 'scoped memory for tpu_custom_call.1']
    #allocation5 [shape = 'u8[65536]{0}', space=vmem, size = 0x10000, scoped, tag = 'input window, operand 3, single buffered']
    #allocation6 [shape = 's32[1]{0}', space=sflag, size = 0x4, scoped, tag = 'scoped memory for tpu_custom_call.1']
    #allocation7 [shape = 'u8[8192]{0}', space=vmem, size = 0x2000, scoped, tag = 'output window, operand 0, single buffered']
    %10 = vsyncpa [#allocation3], 0
    %11 = vsyncpa [#allocation6], 0
    %12 = vsyncpa [#allocation4], 0
    // Predicated region
    $region2: #{tpu_custom_call.1} parent=1 // pred_check
      _
    $region3: #{tpu_custom_call.1} parent=1 // pred_check_branch
      %14 = sbr.rel (0) target = $region5
    $region4: #{tpu_custom_call.1} parent=1 // pred_region
      %s16 = ssub.s32 256, 256
      %17 = vsyncadd [#allocation3], %s16
      %s18 = sshll.u32 [#allocation2], 4
      %s19 = int_to_ptr.vmem [resolvable:$true] %s18
      %24 = dma.hbm_to_vmem [thread:$0]  %s0, 256, %s19, [#allocation3], 128, 128, 8
    $region5: #{tpu_custom_call.1} parent=1 // pred_fallthru
      _
    // Predicated region
    $region6: #{tpu_custom_call.1} parent=1 // pred_check
      _
    $region7: #{tpu_custom_call.1} parent=1 // pred_check_branch
      %26 = sbr.rel (0) target = $region9
    $region8: #{tpu_custom_call.1} parent=1 // pred_region
      _
    $region9: #{tpu_custom_call.1} parent=1 // pred_fallthru
      _
    // Predicated region
    $region10: #{tpu_custom_call.1} parent=1 // pred_check
      _
    $region11: #{tpu_custom_call.1} parent=1 // pred_check_branch
      %28 = sbr.rel (0) target = $region13
    $region12: #{tpu_custom_call.1} parent=1 // pred_region
      _
    $region13: #{tpu_custom_call.1} parent=1 // pred_fallthru
      _
    // Predicated region
    $region14: #{tpu_custom_call.1} parent=1 // pred_check
      _
    $region15: #{tpu_custom_call.1} parent=1 // pred_check_branch
      %30 = sbr.rel (0) target = $region17
    $region16: #{tpu_custom_call.1} parent=1 // pred_region
      %s32 = ssub.s32 2048, 2048
      %33 = vsyncadd [#allocation6], %s32
      %s34 = sshll.u32 [#allocation5], 4
      %s35 = int_to_ptr.vmem [resolvable:$true] %s34
      %40 = dma.hbm_to_vmem [thread:$0]  %s3, 2048, %s35, [#allocation6], 128, 128, 8
    $region17: #{tpu_custom_call.1} parent=1 // pred_fallthru
      _
    // Predicated region
    $region18: #{tpu_custom_call.1} parent=1 // pred_check
      _
    $region19: #{tpu_custom_call.1} parent=1 // pred_check_branch
      %42 = sbr.rel (0) target = $region21
    $region20: #{tpu_custom_call.1} parent=1 // pred_region
      _
    $region21: #{tpu_custom_call.1} parent=1 // pred_fallthru
      _
    // Predicated region
    $region22: #{tpu_custom_call.1} parent=1 // pred_check
      _
    $region23: #{tpu_custom_call.1} parent=1 // pred_check_branch
      %44 = sbr.rel (0) target = $region25
    $region24: #{tpu_custom_call.1} parent=1 // pred_region
      %45 = dma.done [#allocation3], 256
    $region25: #{tpu_custom_call.1} parent=1 // pred_fallthru
      _
    // Predicated region
    $region26: #{tpu_custom_call.1} parent=1 // pred_check
      _
    $region27: #{tpu_custom_call.1} parent=1 // pred_check_branch
      %47 = sbr.rel (0) target = $region29
    $region28: #{tpu_custom_call.1} parent=1 // pred_region
      %48 = dma.done [#allocation6], 2048
    $region29: #{tpu_custom_call.1} parent=1 // pred_fallthru
      _
    %v49 = vld [vmem:[#allocation2] sm:$0xff]
    %v50 = vld [vmem:[#allocation2 + $0x8] sm:$0xff]
    %51 = vadd.xlane.f32.xlu0 %v49
    %v52 = vpop.xlane.xlu0 %51
    %53 = vadd.xlane.f32.xlu0 %v50
    %v54 = vpop.xlane.xlu0 %53
    %v55 = vmul.f32 %v52, 0.03125
    %v56 = vmul.f32 %v54, 0.03125
    %v57 = vsub.f32 %v49, %v55
    %v58 = vsub.f32 %v50, %v56
    %v59 = vlaneseq
    %v60 = vand.u32 %v59, 127
    %vm61 = vcmp.lt.s32.totalorder %v60, 32
    %v62 = vsel %vm61, %v57, 0.0
    %v63 = vsel %vm61, %v58, 0.0
    %v64 = vmul.f32 %v62, %v62
    %v65 = vmul.f32 %v63, %v63
    %66 = vadd.xlane.f32.xlu0 %v64
    %v67 = vpop.xlane.xlu0 %66
    %68 = vadd.xlane.f32.xlu0 %v65
    %v69 = vpop.xlane.xlu0 %68
    %v70 = vmul.f32 %v67, 0.03125
    %v71 = vmul.f32 %v69, 0.03125
    %v72 = vadd.f32 %v70, 1e-05
    %v73 = vadd.f32 %v71, 1e-05
    %v74 = vrsqrt.pop %v72
    %v75 = vrsqrt.pop %v73
    %v76 = vmul.f32 %v62, %v74
    %v77 = vmul.f32 %v63, %v75
    %v78 = vld [vmem:[%s1] sm:$0x1]
    %v80 = vlaneseq
    %v81 = vshrl.u32 %v80, 7
    %v82 = vsub.s32 0, %v81
    %v83 = vrot.slane %v78, %v82
    %v85 = vmul.f32 %v76, %v83
    %v86 = vmul.f32 %v77, %v83
    %v87 = vld [vmem:[%s2] sm:$0x1]
    %v89 = vlaneseq
    %v90 = vshrl.u32 %v89, 7
    %v91 = vsub.s32 0, %v90
    %v92 = vrot.slane %v87, %v91
    %v94 = vadd.f32 %v85, %v92
    %v95 = vadd.f32 %v86, %v92
    %v96 = vld [vmem:[#allocation5] sm:$0xff]
    %v97 = vld [vmem:[#allocation5 + $0x8] sm:$0xff]
    %v98 = vld [vmem:[#allocation5 + $0x10] sm:$0xff]
    %v99 = vld [vmem:[#allocation5 + $0x18] sm:$0xff]
    %v100 = vld [vmem:[#allocation5 + $0x20] sm:$0xff]
    %v101 = vld [vmem:[#allocation5 + $0x28] sm:$0xff]
    %v102 = vld [vmem:[#allocation5 + $0x30] sm:$0xff]
    %v103 = vld [vmem:[#allocation5 + $0x38] sm:$0xff]
    %v104 = vld [vmem:[#allocation5 + $0x40] sm:$0xff]
    %v105 = vld [vmem:[#allocation5 + $0x48] sm:$0xff]
    %v106 = vld [vmem:[#allocation5 + $0x50] sm:$0xff]
    %v107 = vld [vmem:[#allocation5 + $0x58] sm:$0xff]
    %v108 = vld [vmem:[#allocation5 + $0x60] sm:$0xff]
    %v109 = vld [vmem:[#allocation5 + $0x68] sm:$0xff]
    %v110 = vld [vmem:[#allocation5 + $0x70] sm:$0xff]
    %v111 = vld [vmem:[#allocation5 + $0x78] sm:$0xff]
    %v112 = vld [vmem:[%s4] sm:$0x1]
    %v114 = vlaneseq
    %v115 = vshrl.u32 %v114, 7
    %v116 = vsub.s32 0, %v115
    %v117 = vrot.slane %v112, %v116
    %119 = vmatprep.subr.mxu0 0.0
    %120 = vmatpush1.msra.mxu0 %v111
    %121 = vmatprep.subr.mxu0 0.0
    %122 = vmatpush1.msra.mxu0 %v110
    %123 = vmatprep.subr.mxu0 0.0
    %124 = vmatpush1.msra.mxu0 %v109
    %125 = vmatprep.subr.mxu0 0.0
    %126 = vmatpush1.msra.mxu0 %v108
    %127 = vmatprep.subr.mxu0 0.0
    %128 = vmatpush1.msra.mxu0 %v107
    %129 = vmatprep.subr.mxu0 0.0
    %130 = vmatpush1.msra.mxu0 %v106
    %131 = vmatprep.subr.mxu0 0.0
    %132 = vmatpush1.msra.mxu0 %v105
    %133 = vmatprep.subr.mxu0 0.0
    %134 = vmatpush1.msra.mxu0 %v104
    %135 = vmatprep.subr.mxu0 0.0
    %136 = vmatpush1.msra.mxu0 %v103
    %137 = vmatprep.subr.mxu0 0.0
    %138 = vmatpush1.msra.mxu0 %v102
    %139 = vmatprep.subr.mxu0 0.0
    %140 = vmatpush1.msra.mxu0 %v101
    %141 = vmatprep.subr.mxu0 0.0
    %142 = vmatpush1.msra.mxu0 %v100
    %143 = vmatprep.subr.mxu0 0.0
    %144 = vmatpush1.msra.mxu0 %v99
    %145 = vmatprep.subr.mxu0 0.0
    %146 = vmatpush1.msra.mxu0 %v98
    %147 = vmatprep.subr.mxu0 0.0
    %148 = vmatpush1.msra.mxu0 %v97
    %149 = vmatprep.subr.mxu0 0.0
    %150 = vmatpush1.msra.mxu0 %v96
    %151 = vmatprep.subr.mxu0 0.0
    %152 = vmatpush2.msra.mxu0 0.0
    %153 = vmatprep.subr.mxu0 0.0
    %154 = vmatpush2.msra.mxu0 0.0
    %155 = vmatprep.subr.mxu0 0.0
    %156 = vmatpush2.msra.mxu0 0.0
    %157 = vmatprep.subr.mxu0 0.0
    %158 = vmatpush2.msra.mxu0 0.0
    %159 = vmatprep.subr.mxu0 0.0
    %160 = vmatpush2.msra.mxu0 0.0
    %161 = vmatprep.subr.mxu0 0.0
    %162 = vmatpush2.msra.mxu0 0.0
    %163 = vmatprep.subr.mxu0 0.0
    %164 = vmatpush2.msra.mxu0 0.0
    %165 = vmatprep.subr.mxu0 0.0
    %166 = vmatpush2.msra.mxu0 0.0
    %167 = vmatprep.subr.mxu0 0.0
    %168 = vmatpush2.msra.mxu0 0.0
    %169 = vmatprep.subr.mxu0 0.0
    %170 = vmatpush2.msra.mxu0 0.0
    %171 = vmatprep.subr.mxu0 0.0
    %172 = vmatpush2.msra.mxu0 0.0
    %173 = vmatprep.subr.mxu0 0.0
    %174 = vmatpush2.msra.mxu0 0.0
    %175 = vmatprep.subr.mxu0 0.0
    %176 = vmatpush2.msra.mxu0 0.0
    %177 = vmatprep.subr.mxu0 0.0
    %178 = vmatpush2.msra.mxu0 0.0
    %179 = vmatprep.subr.mxu0 0.0
    %180 = vmatpush2.msra.mxu0 0.0
    %181 = vmatprep.subr.mxu0 0.0
    %182 = vmatpush2.msra.mxu0 0.0
    %183 = vmatprep.mubr.f32.mxu0 0.0
    %184 = vmatmul.mubr.f32.gmra.mxu0 %v94
    %v185 = vpop.f32.mrf.mxu0
    %v186 = vadd.f32 %v117, %v185
    %v187 = vpop.f32.mrf.mxu0
    %188 = vmatprep.mubr.f32.mxu0 0.0
    %189 = vmatmul.mubr.f32.gmra.mxu0 %v95
    %v190 = vpop.f32.mrf.mxu0
    %v191 = vadd.f32 %v117, %v190
    %v192 = vpop.f32.mrf.mxu0
    %193 = vdwg.mxu0
    %194 = vst [vmem:[#allocation7] sm:$0xff] %v186
    %195 = vst [vmem:[#allocation7 + $0x8] sm:$0xff] %v191
    // Predicated region
    $region30: #{tpu_custom_call.1} parent=1 // pred_check
      _
    $region31: #{tpu_custom_call.1} parent=1 // pred_check_branch
      %197 = sbr.rel (0) target = $region33
    $region32: #{tpu_custom_call.1} parent=1 // pred_region
      %s199 = ssub.s32 256, 256
      %200 = vsyncadd [#allocation4], %s199
      %s201 = sshll.u32 [#allocation7], 4
      %s202 = int_to_ptr.vmem [resolvable:$true] %s201
      %207 = dma.vmem_to_hbm [thread:$0]  %s202, 256, %s5, [#allocation4], 128, 128, 8
    $region33: #{tpu_custom_call.1} parent=1 // pred_fallthru
      _
    // Predicated region
    $region34: #{tpu_custom_call.1} parent=1 // pred_check
      _
    $region35: #{tpu_custom_call.1} parent=1 // pred_check_branch
      %209 = sbr.rel (0) target = $region37
    $region36: #{tpu_custom_call.1} parent=1 // pred_region
      %210 = dma.done [#allocation4], 256
    $region37: #{tpu_custom_call.1} parent=1 // pred_fallthru
      _
    %211 = vsyncpa [#allocation3], 1
    %212 = vsyncpa [#allocation6], 1
    %213 = vsyncpa [#allocation4], 1

</llo_original>
